<compile_context>
chip_gen: v7x
topology: tpu7x:2x2x1
jax: 0.10.0
libtpu: 0.0.40
codegen_flags: <defaults>
</compile_context>

<pallas_src>
import jax
import jax.numpy as jnp
from jax import lax
from jax.experimental import pallas as pl
from jax.experimental.pallas import tpu as pltpu

_LN_EPS = 1e-5  # nn.LayerNorm default


def _ada_ln_kernel(a_ref, s_ref, w_ref, bp_ref, o_ref):
    # Upcast to f32 for LayerNorm statistics (bf16-safe I/O).
    a = a_ref[...].astype(jnp.float32)
    s = s_ref[...].astype(jnp.float32)

    # LayerNorm over a (no affine).
    mu_a = jnp.mean(a, axis=-1, keepdims=True)
    xa = a - mu_a
    a_n = xa * lax.rsqrt(jnp.mean(xa * xa, axis=-1, keepdims=True) + _LN_EPS)

    # LayerNorm over s.  gamma_s has been folded into w_ref by the wrapper:
    # (s_n * gamma) @ W  ==  s_n @ (gamma[:, None] * W).
    mu_s = jnp.mean(s, axis=-1, keepdims=True)
    xs = s - mu_s
    s_n = xs * lax.rsqrt(jnp.mean(xs * xs, axis=-1, keepdims=True) + _LN_EPS)

    # Single fused MXU matmul: [T, Ds] @ [Ds, 2*Da] -> [T, 2*Da], f32 accum.
    fused = jnp.dot(s_n.astype(w_ref.dtype), w_ref[...],
                    preferred_element_type=jnp.float32)
    da = o_ref.shape[-1]
    gate = jax.nn.sigmoid(fused[:, :da] + bp_ref[...].astype(jnp.float32))
    lin = fused[:, da:]

    o_ref[...] = (gate * a_n + lin).astype(o_ref.dtype)


def _round_up(x, m):
    return (x + m - 1) // m * m


def _choose_tile_rows(n_rows, a_dim, s_dim, in_itemsize, out_itemsize,
                      budget_bytes=24 << 20):
    """Largest row tile keeping (double-buffered) tiles + weights under budget."""
    # Fused weight [Ds, 2*Da] + bias; assume two pipeline copies (worst case).
    weight_bytes = 2 * (s_dim * 2 * a_dim * in_itemsize + a_dim * 4)
    avail = max(budget_bytes - weight_bytes, 1 << 20)
    # Per row: double-buffered a/s/out HBM tiles + f32 temporaries.
    per_row = (2 * (a_dim * in_itemsize + s_dim * in_itemsize
                    + a_dim * out_itemsize)
               + 4 * (2 * a_dim + s_dim + 2 * a_dim))
    t = max(int(avail // per_row), 8)
    if t >= 256:
        t = min((t // 256) * 256, 1024)   # MXU-sized M (256x256 on v6e/v7x)
    else:
        t = (t // 8) * 8
    return min(t, _round_up(n_rows, 8))


def ada_ln(a, s, gamma_s, wp_t, bp, ws_t, *, tile_rows=None):
    """AdaLN forward.

    a:       [N, Da]   activation stream
    s:       [N, Ds]   conditioning stream
    gamma_s: [Ds]      layer_norm_s.weight
    wp_t:    [Ds, Da]  projection[0].weight, pre-transposed
    bp:      [Da]      projection[0].bias
    ws_t:    [Ds, Da]  linear_s.weight, pre-transposed
    returns  [N, Da]
    """
    n_rows, a_dim = a.shape
    s_dim = s.shape[1]
    in_itemsize = jnp.dtype(a.dtype).itemsize

    if tile_rows is None:
        tile_rows = _choose_tile_rows(n_rows, a_dim, s_dim,
                                      in_itemsize, in_itemsize)

    # Pad rows so the grid covers N exactly; padded rows are sliced off.
    n_pad = _round_up(n_rows, tile_rows)
    if n_pad != n_rows:
        a = jnp.pad(a, ((0, n_pad - n_rows), (0, 0)))
        s = jnp.pad(s, ((0, n_pad - n_rows), (0, 0)))

    # Fold gamma_s into both projection weights and fuse them into one
    # matmul operand [Ds, 2*Da] (computed in f32, stored in the input dtype
    # so bf16 inputs use the native bf16 MXU path).
    gamma_col = gamma_s.astype(jnp.float32).reshape(s_dim, 1)
    w_fused = jnp.concatenate(
        [gamma_col * wp_t.astype(jnp.float32),
         gamma_col * ws_t.astype(jnp.float32)], axis=1).astype(a.dtype)
    bp2 = bp.reshape(1, a_dim)

    grid = (n_pad // tile_rows,)

    cost = pl.CostEstimate(
        flops=2 * n_pad * s_dim * 2 * a_dim + 10 * n_pad * (a_dim + s_dim),
        transcendentals=n_pad * a_dim + 2 * n_pad,     # sigmoid + 2 rsqrt/row
        bytes_accessed=(n_pad * (a_dim + s_dim) * in_itemsize   # a, s in
                        + n_pad * a_dim * in_itemsize           # out
                        + s_dim * 2 * a_dim * in_itemsize),     # fused weights
    )

    out = pl.pallas_call(
        _ada_ln_kernel,
        out_shape=jax.ShapeDtypeStruct((n_pad, a_dim), a.dtype),
        grid_spec=pltpu.PrefetchScalarGridSpec(
            num_scalar_prefetch=0,
            grid=grid,
            in_specs=[
                pl.BlockSpec((tile_rows, a_dim), lambda i: (i, 0)),   # a tile
                pl.BlockSpec((tile_rows, s_dim), lambda i: (i, 0)),   # s tile
                pl.BlockSpec((s_dim, 2 * a_dim), lambda i: (0, 0)),   # [g*Wp^T|g*Ws^T]
                pl.BlockSpec((1, a_dim), lambda i: (0, 0)),           # bp
            ],
            out_specs=pl.BlockSpec((tile_rows, a_dim), lambda i: (i, 0)),
        ),
        compiler_params=pltpu.CompilerParams(
            dimension_semantics=("parallel",),     # v7x: rows split across 2 TCs
            vmem_limit_bytes=40 * 1024 * 1024,     # budgeted ~24 MiB + headroom
        ),
        cost_estimate=cost,
    )(a, s, w_fused, bp2)

    return out[:n_rows]


def ada_ln_ref(a, s, gamma_s, wp_t, bp, ws_t):
    eps = 1e-5
    mu_a = a.mean(-1, keepdims=True)
    a_n = (a - mu_a) / jnp.sqrt(((a - mu_a) ** 2).mean(-1, keepdims=True) + eps)
    mu_s = s.mean(-1, keepdims=True)
    s_n = (s - mu_s) / jnp.sqrt(((s - mu_s) ** 2).mean(-1, keepdims=True) + eps)
    s_n = s_n * gamma_s
    gate = jax.nn.sigmoid(s_n @ wp_t + bp)
    return gate * a_n + s_n @ ws_t


if __name__ == "__main__":
    # Small shapes consistent with the module: batch=2, seq=8, a_dim=64, s_dim=32
    batch, seq = 2, 8
    a_dim, s_dim = 64, 32
    n_rows = batch * seq

    key = jax.random.PRNGKey(0)
    k_a, k_s, k_wp, k_bp, k_ws = jax.random.split(key, 5)

    a = jax.random.normal(k_a, (batch, seq, a_dim), dtype=jnp.float32)
    s = jax.random.normal(k_s, (batch, seq, s_dim), dtype=jnp.float32)

    # Deterministic synthetic parameters (shapes per module __init__):
    #   layer_norm_s.weight : [s_dim]   (PyTorch init = ones)
    #   projection[0].weight: [a_dim, s_dim], bias: [a_dim]
    #   linear_s.weight     : [a_dim, s_dim]
    gamma_s = jnp.ones((s_dim,), dtype=jnp.float32)
    wp_t = jax.random.normal(k_wp, (s_dim, a_dim), dtype=jnp.float32) * 0.1  # Wp^T
    bp = jax.random.normal(k_bp, (a_dim,), dtype=jnp.float32) * 0.1
    ws_t = jax.random.normal(k_ws, (s_dim, a_dim), dtype=jnp.float32) * 0.1  # Ws^T

    a_flat = a.reshape(n_rows, a_dim)
    s_flat = s.reshape(n_rows, s_dim)

    out = ada_ln(a_flat, s_flat, gamma_s, wp_t, bp, ws_t)
    out = jax.block_until_ready(out).reshape(batch, seq, a_dim)

    ref = ada_ln_ref(a_flat, s_flat, gamma_s, wp_t, bp, ws_t).reshape(
        batch, seq, a_dim)
    assert jnp.allclose(out, ref, atol=1e-5, rtol=1e-5), "mismatch vs reference"

    print("KERNEL_OK")
</pallas_src>

<mosaic_0001>
module attributes {stable_mosaic.version = 11 : i64} {
  func.func @_ada_ln_kernel(%arg0: i32, %arg1: memref<16x64xf32, #tpu.memory_space<vmem>>, %arg2: memref<16x32xf32, #tpu.memory_space<vmem>>, %arg3: memref<32x128xf32, #tpu.memory_space<vmem>>, %arg4: memref<1x64xf32, #tpu.memory_space<vmem>>, %arg5: memref<16x64xf32, #tpu.memory_space<vmem>>) attributes {dimension_semantics = [#tpu.dimension_semantics<parallel>], iteration_bounds = array<i64: 1>, scalar_prefetch = 0 : i64, scratch_operands = 0 : i64, tpu.core_type = #tpu.core_type<tc>, window_params = [{transform_indices = @transform_0, window_bounds = array<i64: 16, 64>}, {transform_indices = @transform_1, window_bounds = array<i64: 16, 32>}, {pipeline_mode = #tpu.pipeline_mode<synchronous>, transform_indices = @transform_2, window_bounds = array<i64: 32, 128>}, {pipeline_mode = #tpu.pipeline_mode<synchronous>, transform_indices = @transform_3, window_bounds = array<i64: 1, 64>}, {transform_indices = @transform_4, window_bounds = array<i64: 16, 64>}]} {
    %c0 = arith.constant 0 : index
    %c0_0 = arith.constant 0 : index
    %0 = vector.load %arg1[%c0, %c0_0] : memref<16x64xf32, #tpu.memory_space<vmem>>, vector<16x64xf32>
    %c0_1 = arith.constant 0 : index
    %c0_2 = arith.constant 0 : index
    %1 = vector.load %arg2[%c0_1, %c0_2] : memref<16x32xf32, #tpu.memory_space<vmem>>, vector<16x32xf32>
    %cst = arith.constant dense<0.000000e+00> : vector<16xf32>
    %2 = vector.multi_reduction <add>, %0, %cst [1] : vector<16x64xf32> to vector<16xf32>
    %3 = vector.shape_cast %2 : vector<16xf32> to vector<16x1xf32>
    %cst_3 = arith.constant 6.400000e+01 : f32
    %4 = vector.broadcast %cst_3 : f32 to vector<16x1xf32>
    %5 = arith.divf %3, %4 : vector<16x1xf32>
    %6 = vector.broadcast %5 : vector<16x1xf32> to vector<16x64xf32>
    %7 = arith.subf %0, %6 : vector<16x64xf32>
    %8 = arith.mulf %7, %7 : vector<16x64xf32>
    %cst_4 = arith.constant dense<0.000000e+00> : vector<16xf32>
    %9 = vector.multi_reduction <add>, %8, %cst_4 [1] : vector<16x64xf32> to vector<16xf32>
    %10 = vector.shape_cast %9 : vector<16xf32> to vector<16x1xf32>
    %cst_5 = arith.constant 6.400000e+01 : f32
    %11 = vector.broadcast %cst_5 : f32 to vector<16x1xf32>
    %12 = arith.divf %10, %11 : vector<16x1xf32>
    %cst_6 = arith.constant 9.99999974E-6 : f32
    %13 = vector.broadcast %cst_6 : f32 to vector<16x1xf32>
    %14 = arith.addf %12, %13 : vector<16x1xf32>
    %15 = math.rsqrt %14 : vector<16x1xf32>
    %16 = vector.broadcast %15 : vector<16x1xf32> to vector<16x64xf32>
    %17 = arith.mulf %7, %16 : vector<16x64xf32>
    %cst_7 = arith.constant dense<0.000000e+00> : vector<16xf32>
    %18 = vector.multi_reduction <add>, %1, %cst_7 [1] : vector<16x32xf32> to vector<16xf32>
    %19 = vector.shape_cast %18 : vector<16xf32> to vector<16x1xf32>
    %cst_8 = arith.constant 3.200000e+01 : f32
    %20 = vector.broadcast %cst_8 : f32 to vector<16x1xf32>
    %21 = arith.divf %19, %20 : vector<16x1xf32>
    %22 = vector.broadcast %21 : vector<16x1xf32> to vector<16x32xf32>
    %23 = arith.subf %1, %22 : vector<16x32xf32>
    %24 = arith.mulf %23, %23 : vector<16x32xf32>
    %cst_9 = arith.constant dense<0.000000e+00> : vector<16xf32>
    %25 = vector.multi_reduction <add>, %24, %cst_9 [1] : vector<16x32xf32> to vector<16xf32>
    %26 = vector.shape_cast %25 : vector<16xf32> to vector<16x1xf32>
    %cst_10 = arith.constant 3.200000e+01 : f32
    %27 = vector.broadcast %cst_10 : f32 to vector<16x1xf32>
    %28 = arith.divf %26, %27 : vector<16x1xf32>
    %cst_11 = arith.constant 9.99999974E-6 : f32
    %29 = vector.broadcast %cst_11 : f32 to vector<16x1xf32>
    %30 = arith.addf %28, %29 : vector<16x1xf32>
    %31 = math.rsqrt %30 : vector<16x1xf32>
    %32 = vector.broadcast %31 : vector<16x1xf32> to vector<16x32xf32>
    %33 = arith.mulf %23, %32 : vector<16x32xf32>
    %c0_12 = arith.constant 0 : index
    %c0_13 = arith.constant 0 : index
    %34 = vector.load %arg3[%c0_12, %c0_13] : memref<32x128xf32, #tpu.memory_space<vmem>>, vector<32x128xf32>
    %cst_14 = arith.constant dense<0.000000e+00> : vector<16x128xf32>
    %35 = tpu.matmul %33, %34, %cst_14 {dimension_numbers = #tpu.dot_dimension_numbers<[1], [0], [0], [1], [0, 0, 1, 1], [], []>} : vector<16x32xf32>, vector<32x128xf32>, vector<16x128xf32> -> vector<16x128xf32>
    %36 = vector.extract_strided_slice %35 {offsets = [0, 0], sizes = [16, 64], strides = [1, 1]} : vector<16x128xf32> to vector<16x64xf32>
    %c0_15 = arith.constant 0 : index
    %c0_16 = arith.constant 0 : index
    %37 = vector.load %arg4[%c0_15, %c0_16] : memref<1x64xf32, #tpu.memory_space<vmem>>, vector<1x64xf32>
    %38 = vector.broadcast %37 : vector<1x64xf32> to vector<16x64xf32>
    %39 = arith.addf %36, %38 : vector<16x64xf32>
    %40 = arith.negf %39 : vector<16x64xf32>
    %41 = math.exp %40 : vector<16x64xf32>
    %cst_17 = arith.constant 1.000000e+00 : f32
    %42 = vector.broadcast %cst_17 : f32 to vector<16x64xf32>
    %43 = arith.addf %42, %41 : vector<16x64xf32>
    %44 = arith.divf %42, %43 : vector<16x64xf32>
    %45 = vector.extract_strided_slice %35 {offsets = [0, 64], sizes = [16, 64], strides = [1, 1]} : vector<16x128xf32> to vector<16x64xf32>
    %46 = arith.mulf %44, %17 : vector<16x64xf32>
    %47 = arith.addf %46, %45 : vector<16x64xf32>
    %c0_18 = arith.constant 0 : index
    %c0_19 = arith.constant 0 : index
    %48 = vector.load %arg5[%c0_18, %c0_19] : memref<16x64xf32, #tpu.memory_space<vmem>>, vector<16x64xf32>
    tpu.vector_store %arg5[%c0_18, %c0_19], %47 {strides = array<i32>} : memref<16x64xf32, #tpu.memory_space<vmem>>, vector<16x64xf32>,
    return
  }
  func.func @transform_0(%arg0: i32) -> (i32, i32) {
    %c0_i32 = arith.constant 0 : i32
    %c0_i32_0 = arith.constant 0 : i32
    return %arg0, %c0_i32 : i32, i32
  }
  func.func @transform_1(%arg0: i32) -> (i32, i32) {
    %c0_i32 = arith.constant 0 : i32
    %c0_i32_0 = arith.constant 0 : i32
    return %arg0, %c0_i32 : i32, i32
  }
  func.func @transform_2(%arg0: i32) -> (i32, i32) {
    %c0_i32 = arith.constant 0 : i32
    %c0_i32_0 = arith.constant 0 : i32
    %c0_i32_1 = arith.constant 0 : i32
    return %c0_i32, %c0_i32_0 : i32, i32
  }
  func.func @transform_3(%arg0: i32) -> (i32, i32) {
    %c0_i32 = arith.constant 0 : i32
    %c0_i32_0 = arith.constant 0 : i32
    %c0_i32_1 = arith.constant 0 : i32
    return %c0_i32, %c0_i32_0 : i32, i32
  }
  func.func @transform_4(%arg0: i32) -> (i32, i32) {
    %c0_i32 = arith.constant 0 : i32
    %c0_i32_0 = arith.constant 0 : i32
    return %arg0, %c0_i32 : i32, i32
  }
}

</mosaic_0001>

<llo_original>
// kernel: tpu_custom_call.1
$region0: #{tpu_custom_call.1}
  #allocation0 [shape = 'u32[]', space=smem, size = 0x4, offset = 0x4, fixed_abs, tag = 'smem constant byte address 0x4 - core index']
  #allocation1 [shape = 'u32[144,128]{1,0:T(1,128)}', space=vmem, size = 0x12000, scoped, tag = 'internal scratch']
  %s0 = inlined_call_operand.hbm [shape: f32[16,64], index: 0, kind: input, shape index: {}]
  %s1 = inlined_call_operand.hbm [shape: f32[16,32], index: 1, kind: input, shape index: {}]
  %s2 = inlined_call_operand.hbm [shape: f32[32,128], index: 2, kind: input, shape index: {}]
  %s3 = inlined_call_operand.vmem [shape: f32[1,64], index: 3, kind: input, shape index: {}]
  %s4 = inlined_call_operand.hbm [shape: f32[16,64], index: 4, kind: output, shape index: {}]
  %s5 = sld [smem:[#allocation0]]
  $region38: #{tpu_custom_call.1} parent=0
    _
  %s7 = ssub.s32 1, %s5
  %s8 = scalar_select 0, %s7, %s5
  $region1: #{tpu_custom_call.1} parent=0
    #allocation2 [shape = 'u8[8192]{0}', space=vmem, size = 0x2000, scoped, tag = 'input window, operand 0, single buffered']
    #allocation3 [shape = 's32[1]{0}', space=sflag, size = 0x4, scoped, tag = 'scoped memory for tpu_custom_call.1']
    #allocation4 [shape = 's32[1]{0}', space=sflag, size = 0x4, scoped, tag = 'scoped memory for tpu_custom_call.1']
    #allocation5 [shape = 'u8[8192]{0}', space=vmem, size = 0x2000, scoped, tag = 'input window, operand 1, single buffered']
    #allocation6 [shape = 's32[1]{0}', space=sflag, size = 0x4, scoped, tag = 'scoped memory for tpu_custom_call.1']
    #allocation7 [shape = 'u8[16384]{0}', space=vmem, size = 0x4000, scoped, tag = 'input window, operand 2, single buffered']
    #allocation8 [shape = 'u8[8192]{0}', space=vmem, size = 0x2000, scoped, tag = 'output window, operand 0, single buffered']
    %9 = vsyncpa [#allocation3], 0
    %10 = vsyncpa [#allocation6], 0
    %11 = vsyncpa [#allocation4], 0
    // Predicated region
    $region2: #{tpu_custom_call.1} parent=1 // pred_check
      _
    $region3: #{tpu_custom_call.1} parent=1 // pred_check_branch
      %13 = sbr.rel (0) target = $region5
    $region4: #{tpu_custom_call.1} parent=1 // pred_region
      %s15 = ssub.s32 256, 256
      %16 = vsyncadd [#allocation3], %s15
      %s17 = sshll.u32 [#allocation2], 4
      %s18 = int_to_ptr.vmem [resolvable:$true] %s17
      %23 = dma.hbm_to_vmem [thread:$0]  %s0, 256, %s18, [#allocation3], 128, 128, 8
    $region5: #{tpu_custom_call.1} parent=1 // pred_fallthru
      _
    // Predicated region
    $region6: #{tpu_custom_call.1} parent=1 // pred_check
      _
    $region7: #{tpu_custom_call.1} parent=1 // pred_check_branch
      %25 = sbr.rel (0) target = $region9
    $region8: #{tpu_custom_call.1} parent=1 // pred_region
      %s27 = ssub.s32 256, 256
      %28 = vsyncadd [#allocation6], %s27
      %s29 = sshll.u32 [#allocation5], 4
      %s30 = int_to_ptr.vmem [resolvable:$true] %s29
      %35 = dma.hbm_to_vmem [thread:$0]  %s1, 256, %s30, [#allocation6], 128, 128, 8
    $region9: #{tpu_custom_call.1} parent=1 // pred_fallthru
      _
    // Predicated region
    $region10: #{tpu_custom_call.1} parent=1 // pred_check
      _
    $region11: #{tpu_custom_call.1} parent=1 // pred_check_branch
      %37 = sbr.rel (0) target = $region13
    $region12: #{tpu_custom_call.1} parent=1 // pred_region
      %s39 = ssub.s32 512, 512
      %40 = vsyncadd [#allocation6], %s39
      %s41 = sshll.u32 [#allocation7], 4
      %s42 = int_to_ptr.vmem [resolvable:$true] %s41
      %47 = dma.hbm_to_vmem [thread:$0]  %s2, 512, %s42, [#allocation6], 128, 128, 8
    $region13: #{tpu_custom_call.1} parent=1 // pred_fallthru
      _
    // Predicated region
    $region14: #{tpu_custom_call.1} parent=1 // pred_check
      _
    $region15: #{tpu_custom_call.1} parent=1 // pred_check_branch
      %49 = sbr.rel (0) target = $region17
    $region16: #{tpu_custom_call.1} parent=1 // pred_region
      _
    $region17: #{tpu_custom_call.1} parent=1 // pred_fallthru
      _
    // Predicated region
    $region18: #{tpu_custom_call.1} parent=1 // pred_check
      _
    $region19: #{tpu_custom_call.1} parent=1 // pred_check_branch
      %51 = sbr.rel (0) target = $region21
    $region20: #{tpu_custom_call.1} parent=1 // pred_region
      %52 = dma.done [#allocation3], 256
    $region21: #{tpu_custom_call.1} parent=1 // pred_fallthru
      _
    // Predicated region
    $region22: #{tpu_custom_call.1} parent=1 // pred_check
      _
    $region23: #{tpu_custom_call.1} parent=1 // pred_check_branch
      %54 = sbr.rel (0) target = $region25
    $region24: #{tpu_custom_call.1} parent=1 // pred_region
      %55 = dma.done [#allocation6], 256
    $region25: #{tpu_custom_call.1} parent=1 // pred_fallthru
      _
    // Predicated region
    $region26: #{tpu_custom_call.1} parent=1 // pred_check
      _
    $region27: #{tpu_custom_call.1} parent=1 // pred_check_branch
      %57 = sbr.rel (0) target = $region29
    $region28: #{tpu_custom_call.1} parent=1 // pred_region
      %58 = dma.done [#allocation6], 512
    $region29: #{tpu_custom_call.1} parent=1 // pred_fallthru
      _
    %v59 = vld [vmem:[#allocation2] sm:$0xff]
    %v60 = vld [vmem:[#allocation2 + $0x8] sm:$0xff]
    %v61 = vld [vmem:[#allocation5] sm:$0xff]
    %v62 = vld [vmem:[#allocation5 + $0x8] sm:$0xff]
    %vm63 = vcmask 523264
    %v64 = vsel %vm63, %v59, 0.0
    %65 = vadd.xlane.f32.xlu0 %v64
    %v66 = vpop.xlane.xlu0 %65
    %v67 = vsel %vm63, %v60, 0.0
    %68 = vadd.xlane.f32.xlu0 %v67
    %v69 = vpop.xlane.xlu0 %68
    %v70 = vrcp.pop 64.0
    %v71 = vmul.f32 %v66, %v70
    %v72 = vmul.f32 %v69, %v70
    %v73 = vsub.f32 %v59, %v71
    %v74 = vsub.f32 %v60, %v72
    %v75 = vmul.f32 %v73, %v73
    %v76 = vmul.f32 %v74, %v74
    %v77 = vsel %vm63, %v75, 0.0
    %78 = vadd.xlane.f32.xlu0 %v77
    %v79 = vpop.xlane.xlu0 %78
    %v80 = vsel %vm63, %v76, 0.0
    %81 = vadd.xlane.f32.xlu0 %v80
    %v82 = vpop.xlane.xlu0 %81
    %v83 = vmul.f32 %v79, %v70
    %v84 = vmul.f32 %v82, %v70
    %v85 = vadd.f32 %v83, 1e-05
    %v86 = vadd.f32 %v84, 1e-05
    %v87 = vrsqrt.pop %v85
    %v88 = vrsqrt.pop %v86
    %v89 = vmul.f32 %v73, %v87
    %v90 = vmul.f32 %v74, %v88
    %vm91 = vcmask 261120
    %v92 = vsel %vm91, %v61, 0.0
    %93 = vadd.xlane.f32.xlu0 %v92
    %v94 = vpop.xlane.xlu0 %93
    %v95 = vsel %vm91, %v62, 0.0
    %96 = vadd.xlane.f32.xlu0 %v95
    %v97 = vpop.xlane.xlu0 %96
    %v98 = vrcp.pop 32.0
    %v99 = vmul.f32 %v94, %v98
    %v100 = vmul.f32 %v97, %v98
    %v101 = vsub.f32 %v61, %v99
    %v102 = vsub.f32 %v62, %v100
    %v103 = vmul.f32 %v101, %v101
    %v104 = vmul.f32 %v102, %v102
    %v105 = vsel %vm91, %v103, 0.0
    %106 = vadd.xlane.f32.xlu0 %v105
    %v107 = vpop.xlane.xlu0 %106
    %v108 = vsel %vm91, %v104, 0.0
    %109 = vadd.xlane.f32.xlu0 %v108
    %v110 = vpop.xlane.xlu0 %109
    %v111 = vmul.f32 %v107, %v98
    %v112 = vmul.f32 %v110, %v98
    %v113 = vadd.f32 %v111, 1e-05
    %v114 = vadd.f32 %v112, 1e-05
    %v115 = vrsqrt.pop %v113
    %v116 = vrsqrt.pop %v114
    %v117 = vmul.f32 %v101, %v115
    %v118 = vmul.f32 %v102, %v116
    %v119 = vld [vmem:[#allocation7] sm:$0xff]
    %v120 = vld [vmem:[#allocation7 + $0x8] sm:$0xff]
    %v121 = vld [vmem:[#allocation7 + $0x10] sm:$0xff]
    %v122 = vld [vmem:[#allocation7 + $0x18] sm:$0xff]
    %v124 = vsel %vm91, %v117, 0
    %v127 = vsel %vm91, %v118, 0
    %129 = vmatprep.subr.mxu0 0.0
    %130 = vmatpush1.msra.mxu0 %v119
    %131 = vmatprep.subr.mxu0 0.0
    %132 = vmatpush1.msra.mxu0 %v120
    %133 = vmatprep.subr.mxu0 0.0
    %134 = vmatpush1.msra.mxu0 %v121
    %135 = vmatprep.subr.mxu0 0.0
    %136 = vmatpush1.msra.mxu0 %v122
    %137 = vmatprep.subr.mxu0 0.0
    %138 = vmatpush1.msra.mxu0 0.0
    %139 = vmatprep.subr.mxu0 0.0
    %140 = vmatpush1.msra.mxu0 0.0
    %141 = vmatprep.subr.mxu0 0.0
    %142 = vmatpush1.msra.mxu0 0.0
    %143 = vmatprep.subr.mxu0 0.0
    %144 = vmatpush1.msra.mxu0 0.0
    %145 = vmatprep.subr.mxu0 0.0
    %146 = vmatpush1.msra.mxu0 0.0
    %147 = vmatprep.subr.mxu0 0.0
    %148 = vmatpush1.msra.mxu0 0.0
    %149 = vmatprep.subr.mxu0 0.0
    %150 = vmatpush1.msra.mxu0 0.0
    %151 = vmatprep.subr.mxu0 0.0
    %152 = vmatpush1.msra.mxu0 0.0
    %153 = vmatprep.subr.mxu0 0.0
    %154 = vmatpush1.msra.mxu0 0.0
    %155 = vmatprep.subr.mxu0 0.0
    %156 = vmatpush1.msra.mxu0 0.0
    %157 = vmatprep.subr.mxu0 0.0
    %158 = vmatpush1.msra.mxu0 0.0
    %159 = vmatprep.subr.mxu0 0.0
    %160 = vmatpush1.msra.mxu0 0.0
    %161 = vmatprep.subr.mxu0 0.0
    %162 = vmatpush1.msra.mxu0 0.0
    %163 = vmatprep.subr.mxu0 0.0
    %164 = vmatpush1.msra.mxu0 0.0
    %165 = vmatprep.subr.mxu0 0.0
    %166 = vmatpush1.msra.mxu0 0.0
    %167 = vmatprep.subr.mxu0 0.0
    %168 = vmatpush1.msra.mxu0 0.0
    %169 = vmatprep.subr.mxu0 0.0
    %170 = vmatpush1.msra.mxu0 0.0
    %171 = vmatprep.subr.mxu0 0.0
    %172 = vmatpush1.msra.mxu0 0.0
    %173 = vmatprep.subr.mxu0 0.0
    %174 = vmatpush1.msra.mxu0 0.0
    %175 = vmatprep.subr.mxu0 0.0
    %176 = vmatpush1.msra.mxu0 0.0
    %177 = vmatprep.subr.mxu0 0.0
    %178 = vmatpush1.msra.mxu0 0.0
    %179 = vmatprep.subr.mxu0 0.0
    %180 = vmatpush1.msra.mxu0 0.0
    %181 = vmatprep.subr.mxu0 0.0
    %182 = vmatpush1.msra.mxu0 0.0
    %183 = vmatprep.subr.mxu0 0.0
    %184 = vmatpush1.msra.mxu0 0.0
    %185 = vmatprep.subr.mxu0 0.0
    %186 = vmatpush1.msra.mxu0 0.0
    %187 = vmatprep.subr.mxu0 0.0
    %188 = vmatpush1.msra.mxu0 0.0
    %189 = vmatprep.subr.mxu0 0.0
    %190 = vmatpush1.msra.mxu0 0.0
    %191 = vmatprep.subr.mxu0 0.0
    %192 = vmatpush1.msra.mxu0 0.0
    %193 = vmatprep.mubr.f32.mxu0 0.0
    %194 = vmatmul.mubr.f32.gmra.mrb[0].mxu0 %v124
    %v195 = vpop.f32.mrb[0].mxu0
    %v196 = vadd.f32 0.0, %v195
    %v197 = vpop.f32.mrb[0].mxu0
    %198 = vmatprep.mubr.f32.mxu0 0.0
    %199 = vmatmul.mubr.f32.gmra.mrb[0].mxu0 %v127
    %v200 = vpop.f32.mrb[0].mxu0
    %v201 = vadd.f32 0.0, %v200
    %v202 = vpop.f32.mrb[0].mxu0
    %203 = vdwg.mxu0
    %v204 = vld [vmem:[%s3] sm:$0x1]
    %v206 = vlaneseq
    %v207 = vshrl.u32 %v206, 7
    %v208 = vsub.s32 0, %v207
    %v209 = vrot.slane %v204, %v208
    %v211 = vadd.f32 %v196, %v209
    %v212 = vadd.f32 %v201, %v209
    %v213 = vxor.u32 %v211, 2147483648
    %v214 = vxor.u32 %v212, 2147483648
    %v215 = vmul.f32 %v213, 1.442695
    %v216 = vpow.pop %v215
    %v217 = vmul.f32 %v214, 1.442695
    %v218 = vpow.pop %v217
    %v219 = vadd.f32 %v216, 1.0
    %v220 = vadd.f32 %v218, 1.0
    %v221 = vrcp.pop %v219
    %v222 = vmul.f32 1.0, %v221
    %v223 = vrcp.pop %v220
    %v224 = vmul.f32 1.0, %v223
    %v225 = vmul.f32 %v222, %v89
    %v226 = vmul.f32 %v224, %v90
    %229 = vrot.lane.b32.xlu0 %v196, 64
    %v230 = vpop.permute.xlu0 %229
    %231 = vrot.lane.b32.xlu0 %v201, 64
    %v232 = vpop.permute.xlu0 %231
    %v235 = vadd.f32 %v225, %v230
    %v236 = vadd.f32 %v226, %v232
    %237 = vst.msk [vmem:[#allocation8] sm:$0xff] %vm63, %v235
    %238 = vst.msk [vmem:[#allocation8 + $0x8] sm:$0xff] %vm63, %v236
    // Predicated region
    $region30: #{tpu_custom_call.1} parent=1 // pred_check
      _
    $region31: #{tpu_custom_call.1} parent=1 // pred_check_branch
      %240 = sbr.rel (0) target = $region33
    $region32: #{tpu_custom_call.1} parent=1 // pred_region
      %s242 = ssub.s32 256, 256
      %243 = vsyncadd [#allocation4], %s242
      %s244 = sshll.u32 [#allocation8], 4
      %s245 = int_to_ptr.vmem [resolvable:$true] %s244
      %250 = dma.vmem_to_hbm [thread:$0]  %s245, 256, %s4, [#allocation4], 128, 128, 8
    $region33: #{tpu_custom_call.1} parent=1 // pred_fallthru
      _
    // Predicated region
    $region34: #{tpu_custom_call.1} parent=1 // pred_check
      _
    $region35: #{tpu_custom_call.1} parent=1 // pred_check_branch
      %252 = sbr.rel (0) target = $region37
    $region36: #{tpu_custom_call.1} parent=1 // pred_region
      %253 = dma.done [#allocation4], 256
    $region37: #{tpu_custom_call.1} parent=1 // pred_fallthru
      _
    %254 = vsyncpa [#allocation3], 1
    %255 = vsyncpa [#allocation6], 1
    %256 = vsyncpa [#allocation4], 1

</llo_original>
